<compile_context>
chip_gen: v7x
topology: tpu7x:2x2x1
jax: 0.10.0
libtpu: 0.0.40
codegen_flags: <defaults>
</compile_context>

<pallas_src>
import jax
import jax.numpy as jnp
from jax.experimental import pallas as pl
from jax.experimental.pallas import tpu as pltpu


def _conv_res_block_kernel(x_ref, w1_ref, b1_ref, w2_ref, b2_ref, o_ref):
    # x_ref: (1, C, TL) activation tile; weights (C, C) / biases (C, 1) resident.
    x = x_ref[0]                                    # (C, TL), input dtype
    x_f32 = x.astype(jnp.float32)

    h = jnp.maximum(x, 0)                           # ReLU (kept in MXU operand dtype)
    y = jnp.dot(w1_ref[...], h, preferred_element_type=jnp.float32)
    y = y + b1_ref[...]                             # Conv1d_1 (1x1), f32 accum
    y = jnp.maximum(y, 0.0)                         # ReLU
    y = y.astype(w2_ref.dtype)                      # bf16 MXU operand if input is bf16
    z = jnp.dot(w2_ref[...], y, preferred_element_type=jnp.float32)
    z = z + b2_ref[...]                             # Conv1d_2 (1x1), f32 accum
    o_ref[0] = (z + x_f32).astype(o_ref.dtype)      # residual add in f32, cast once


def conv_res_block(x, w1, b1, w2, b2, *, block_len=32768):
    """Fused ConvResBlock forward.

    x : (B, C, L)   activations (NCL layout, as for nn.Conv1d)
    w1, w2 : (C, C) or (C, C, 1)  conv weights (out_ch, in_ch[, k=1])
    b1, b2 : (C,)   conv biases
    Returns an array with the same shape/dtype as x.
    """
    B, C, L = x.shape
    if w1.ndim == 3:
        w1 = w1[:, :, 0]
    if w2.ndim == 3:
        w2 = w2[:, :, 0]

    LANE = 128
    # Tile along L.  If L fits in one tile, take the full extent (always legal even if
    # L is not a multiple of 128).  Otherwise use a large 128-multiple tile; the ragged
    # tail block is masked by Pallas (safe: 1x1 conv has no cross-position interaction).
    if L <= block_len:
        tl = L
        n_l = 1
    else:
        tl = max(LANE, (block_len // LANE) * LANE)
        n_l = pl.cdiv(L, tl)

    # bf16 inputs -> bf16 MXU operands (f32 accumulation); otherwise f32.
    w_dtype = jnp.bfloat16 if x.dtype == jnp.bfloat16 else jnp.float32
    w1c = w1.astype(w_dtype)
    w2c = w2.astype(w_dtype)
    b1c = b1.reshape(C, 1).astype(jnp.float32)
    b2c = b2.reshape(C, 1).astype(jnp.float32)

    itemsize = jnp.dtype(x.dtype).itemsize
    cost = pl.CostEstimate(
        flops=int(B * L * (4 * C * C + 5 * C)),          # two 1x1 convs + relu/bias/residual
        transcendentals=0,
        bytes_accessed=int(2 * B * C * L * itemsize + 2 * (C * C + C) * 4),
    )

    out = pl.pallas_call(
        _conv_res_block_kernel,
        out_shape=jax.ShapeDtypeStruct((B, C, L), x.dtype),
        grid_spec=pltpu.PrefetchScalarGridSpec(
            num_scalar_prefetch=0,
            grid=(B, n_l),
            in_specs=[
                pl.BlockSpec((1, C, tl), lambda b, l: (b, 0, l)),  # x tile (lane-dense)
                pl.BlockSpec((C, C), lambda b, l: (0, 0)),         # W1 (resident)
                pl.BlockSpec((C, 1), lambda b, l: (0, 0)),         # b1
                pl.BlockSpec((C, C), lambda b, l: (0, 0)),         # W2 (resident)
                pl.BlockSpec((C, 1), lambda b, l: (0, 0)),         # b2
            ],
            out_specs=pl.BlockSpec((1, C, tl), lambda b, l: (b, 0, l)),
        ),
        compiler_params=pltpu.CompilerParams(
            dimension_semantics=("parallel", "parallel")),
        cost_estimate=cost,
    )(x, w1c, b1c, w2c, b2c)

    return out


def init_params(key, channels, dtype=jnp.float32):
    """PyTorch-style (Kaiming-uniform-ish) init for two Conv1d(channels, channels, 1)."""
    k1, k2, k3, k4 = jax.random.split(key, 4)
    bound = 1.0 / jnp.sqrt(channels)  # fan_in = channels * kernel_size(=1)
    w1 = jax.random.uniform(k1, (channels, channels, 1), dtype, -bound, bound)
    b1 = jax.random.uniform(k2, (channels,), dtype, -bound, bound)
    w2 = jax.random.uniform(k3, (channels, channels, 1), dtype, -bound, bound)
    b2 = jax.random.uniform(k4, (channels,), dtype, -bound, bound)
    return w1, b1, w2, b2


def _reference(x, w1, b1, w2, b2):
    w1 = w1[:, :, 0] if w1.ndim == 3 else w1
    w2 = w2[:, :, 0] if w2.ndim == 3 else w2
    h = jnp.maximum(x, 0.0)
    h = jnp.einsum("oc,bcl->bol", w1, h) + b1[None, :, None]
    h = jnp.maximum(h, 0.0)
    h = jnp.einsum("oc,bcl->bol", w2, h) + b2[None, :, None]
    return h + x


if __name__ == "__main__":
    # nn.Conv1d(3, 3, 1) => 3 channels; non-multiple-of-128 length exercises the
    # full-extent (unpadded) tile path.
    batch, channels, length = 2, 3, 200

    key = jax.random.PRNGKey(0)
    kx, kp = jax.random.split(key)
    x = jax.random.normal(kx, (batch, channels, length), dtype=jnp.float32)
    w1, b1, w2, b2 = init_params(kp, channels)

    out = conv_res_block(x, w1, b1, w2, b2)
    out = jax.block_until_ready(out)

    ref = _reference(x, w1, b1, w2, b2)
    assert out.shape == x.shape and out.dtype == x.dtype
    assert jnp.allclose(out, ref, atol=1e-5, rtol=1e-5)

    print("KERNEL_OK")
</pallas_src>

<mosaic_0001>
module attributes {stable_mosaic.version = 11 : i64} {
  func.func @_conv_res_block_kernel(%arg0: i32, %arg1: i32, %arg2: memref<1x3x200xf32, #tpu.memory_space<vmem>>, %arg3: memref<3x3xf32, #tpu.memory_space<vmem>>, %arg4: memref<3x1xf32, #tpu.memory_space<vmem>>, %arg5: memref<3x3xf32, #tpu.memory_space<vmem>>, %arg6: memref<3x1xf32, #tpu.memory_space<vmem>>, %arg7: memref<1x3x200xf32, #tpu.memory_space<vmem>>) attributes {dimension_semantics = [#tpu.dimension_semantics<parallel>, #tpu.dimension_semantics<parallel>], iteration_bounds = array<i64: 2, 1>, scalar_prefetch = 0 : i64, scratch_operands = 0 : i64, tpu.core_type = #tpu.core_type<tc>, window_params = [{transform_indices = @transform_0, window_bounds = array<i64: 1, 3, 200>}, {pipeline_mode = #tpu.pipeline_mode<synchronous>, transform_indices = @transform_1, window_bounds = array<i64: 3, 3>}, {pipeline_mode = #tpu.pipeline_mode<synchronous>, transform_indices = @transform_2, window_bounds = array<i64: 3, 1>}, {pipeline_mode = #tpu.pipeline_mode<synchronous>, transform_indices = @transform_3, window_bounds = array<i64: 3, 3>}, {pipeline_mode = #tpu.pipeline_mode<synchronous>, transform_indices = @transform_4, window_bounds = array<i64: 3, 1>}, {transform_indices = @transform_5, window_bounds = array<i64: 1, 3, 200>}]} {
    %c0 = arith.constant 0 : index
    %c0_0 = arith.constant 0 : index
    %c0_1 = arith.constant 0 : index
    %0 = vector.load %arg2[%c0, %c0_0, %c0_1] : memref<1x3x200xf32, #tpu.memory_space<vmem>>, vector<1x3x200xf32>
    %1 = vector.shape_cast %0 : vector<1x3x200xf32> to vector<3x200xf32>
    %cst = arith.constant 0.000000e+00 : f32
    %2 = vector.broadcast %cst : f32 to vector<3x200xf32>
    %3 = arith.maximumf %1, %2 : vector<3x200xf32>
    %c0_2 = arith.constant 0 : index
    %c0_3 = arith.constant 0 : index
    %4 = vector.load %arg3[%c0_2, %c0_3] : memref<3x3xf32, #tpu.memory_space<vmem>>, vector<3x3xf32>
    %cst_4 = arith.constant dense<0.000000e+00> : vector<3x200xf32>
    %5 = tpu.matmul %4, %3, %cst_4 {dimension_numbers = #tpu.dot_dimension_numbers<[1], [0], [0], [1], [0, 0, 1, 1], [], []>} : vector<3x3xf32>, vector<3x200xf32>, vector<3x200xf32> -> vector<3x200xf32>
    %c0_5 = arith.constant 0 : index
    %c0_6 = arith.constant 0 : index
    %6 = vector.load %arg4[%c0_5, %c0_6] : memref<3x1xf32, #tpu.memory_space<vmem>>, vector<3x1xf32>
    %7 = vector.broadcast %6 : vector<3x1xf32> to vector<3x200xf32>
    %8 = arith.addf %5, %7 : vector<3x200xf32>
    %cst_7 = arith.constant 0.000000e+00 : f32
    %9 = vector.broadcast %cst_7 : f32 to vector<3x200xf32>
    %10 = arith.maximumf %8, %9 : vector<3x200xf32>
    %c0_8 = arith.constant 0 : index
    %c0_9 = arith.constant 0 : index
    %11 = vector.load %arg5[%c0_8, %c0_9] : memref<3x3xf32, #tpu.memory_space<vmem>>, vector<3x3xf32>
    %cst_10 = arith.constant dense<0.000000e+00> : vector<3x200xf32>
    %12 = tpu.matmul %11, %10, %cst_10 {dimension_numbers = #tpu.dot_dimension_numbers<[1], [0], [0], [1], [0, 0, 1, 1], [], []>} : vector<3x3xf32>, vector<3x200xf32>, vector<3x200xf32> -> vector<3x200xf32>
    %c0_11 = arith.constant 0 : index
    %c0_12 = arith.constant 0 : index
    %13 = vector.load %arg6[%c0_11, %c0_12] : memref<3x1xf32, #tpu.memory_space<vmem>>, vector<3x1xf32>
    %14 = vector.broadcast %13 : vector<3x1xf32> to vector<3x200xf32>
    %15 = arith.addf %12, %14 : vector<3x200xf32>
    %16 = arith.addf %15, %1 : vector<3x200xf32>
    %c0_13 = arith.constant 0 : index
    %c0_14 = arith.constant 0 : index
    %c0_15 = arith.constant 0 : index
    %17 = vector.load %arg7[%c0_13, %c0_14, %c0_15] : memref<1x3x200xf32, #tpu.memory_space<vmem>>, vector<1x3x200xf32>
    %18 = vector.shape_cast %17 : vector<1x3x200xf32> to vector<3x200xf32>
    %19 = vector.shape_cast %16 : vector<3x200xf32> to vector<1x3x200xf32>
    tpu.vector_store %arg7[%c0_13, %c0_14, %c0_15], %19 {strides = array<i32>} : memref<1x3x200xf32, #tpu.memory_space<vmem>>, vector<1x3x200xf32>,
    return
  }
  func.func @transform_0(%arg0: i32, %arg1: i32) -> (i32, i32, i32) {
    %c0_i32 = arith.constant 0 : i32
    %c0_i32_0 = arith.constant 0 : i32
    return %arg0, %c0_i32, %arg1 : i32, i32, i32
  }
  func.func @transform_1(%arg0: i32, %arg1: i32) -> (i32, i32) {
    %c0_i32 = arith.constant 0 : i32
    %c0_i32_0 = arith.constant 0 : i32
    %c0_i32_1 = arith.constant 0 : i32
    return %c0_i32, %c0_i32_0 : i32, i32
  }
  func.func @transform_2(%arg0: i32, %arg1: i32) -> (i32, i32) {
    %c0_i32 = arith.constant 0 : i32
    %c0_i32_0 = arith.constant 0 : i32
    %c0_i32_1 = arith.constant 0 : i32
    return %c0_i32, %c0_i32_0 : i32, i32
  }
  func.func @transform_3(%arg0: i32, %arg1: i32) -> (i32, i32) {
    %c0_i32 = arith.constant 0 : i32
    %c0_i32_0 = arith.constant 0 : i32
    %c0_i32_1 = arith.constant 0 : i32
    return %c0_i32, %c0_i32_0 : i32, i32
  }
  func.func @transform_4(%arg0: i32, %arg1: i32) -> (i32, i32) {
    %c0_i32 = arith.constant 0 : i32
    %c0_i32_0 = arith.constant 0 : i32
    %c0_i32_1 = arith.constant 0 : i32
    return %c0_i32, %c0_i32_0 : i32, i32
  }
  func.func @transform_5(%arg0: i32, %arg1: i32) -> (i32, i32, i32) {
    %c0_i32 = arith.constant 0 : i32
    %c0_i32_0 = arith.constant 0 : i32
    return %arg0, %c0_i32, %arg1 : i32, i32, i32
  }
}

</mosaic_0001>

<llo_original>
// kernel: tpu_custom_call.1
$region0: #{tpu_custom_call.1}
  #allocation0 [shape = 'u32[]', space=smem, size = 0x4, offset = 0x4, fixed_abs, tag = 'smem constant byte address 0x4 - core index']
  #allocation1 [shape = 'u32[144,128]{1,0:T(1,128)}', space=vmem, size = 0x12000, scoped, tag = 'internal scratch']
  %s0 = inlined_call_operand.vmem [shape: f32[2,3,200], index: 0, kind: input, shape index: {}]
  %s1 = inlined_call_operand.vmem [shape: f32[3,3], index: 1, kind: input, shape index: {}]
  %s2 = inlined_call_operand.vmem [shape: f32[3,1], index: 2, kind: input, shape index: {}]
  %s3 = inlined_call_operand.vmem [shape: f32[3,3], index: 3, kind: input, shape index: {}]
  %s4 = inlined_call_operand.vmem [shape: f32[3,1], index: 4, kind: input, shape index: {}]
  %s5 = inlined_call_operand.vmem [shape: f32[2,3,200], index: 5, kind: output, shape index: {}]
  %s6 = sld [smem:[#allocation0]]
  $region53: #{tpu_custom_call.1} parent=0
    _
  %s8 = ssub.s32 1, %s6
  %s9 = scalar_select 0, %s8, %s6
  loop: start=0, step=1, limit=4
  $region2: #{tpu_custom_call.1} parent=0 // loop_pre_header
    _
  $region3: #{tpu_custom_call.1} parent=0 // loop_header
    %s11 = sphi 0, %s15
    %p12 = scmp.ge.s32.totalorder %s11, 4
    %s18 = sphi 0, %s30
    %s19 = sphi 0, %s26
    %s20 = sphi 0, %s18
    %s21 = sphi 0, %s19
    %s22 = sphi 0, %s20
    %s23 = sphi 0, %s21
    %s35 = sphi 0, %s37
    %s38 = sphi 0, %s35
    %s39 = sphi 0, %s38
    %s55 = sphi 0, %s39
    %s59 = sphi 0, %s59
    %s61 = sphi 0, %s59
    %s62 = sphi 0, %s61
    %s76 = sphi 0, %s62
    %s80 = sphi 0, %s80
    %s82 = sphi 0, %s80
    %s83 = sphi 0, %s82
    %s97 = sphi 0, %s83
    %s101 = sphi 0, %s101
    %s103 = sphi 0, %s101
    %s104 = sphi 0, %s103
    %s118 = sphi 0, %s104
    %s122 = sphi 0, %s122
    %s124 = sphi 0, %s122
    %s125 = sphi 0, %s124
    %s139 = sphi 0, %s125
    %s147 = sphi 0, %s149
    %s150 = sphi 0, %s147
    %s151 = sphi 0, %s150
    %s167 = sphi 0, %s151
  $region4: #{tpu_custom_call.1} parent=0 // loop_header_branch
    %14 = sbr.rel (%p12) target = $region8
  $region5: #{tpu_custom_call.1} parent=0 // loop_body
    %s16 = ssub.s32 %s11, 1
    %s17 = ssub.s32 %s11, 2
    %s24 = sadd.s32 1, %s19
    %p25 = scmp.ge.s32.totalorder %s24, 1
    %s26 = scalar_select %p25, 0, %s24
    %s27 = sadd.s32 1, %s18
    %s28 = scalar_select %p25, %s27, %s18
    %p29 = scmp.ge.s32.totalorder %s28, 2
    %s30 = scalar_select %p29, 0, %s28
    %s31 = ssub.s32 %s18, %s30
    %s32 = ssub.s32 %s19, %s26
    %s33 = sor.u32 %s31, %s32
    %p34 = scmp.eq.s32.totalorder %s33, 0
    %s36 = sadd.s32 %s35, 1
    %s37 = scalar_select %p34, %s35, %s36
    %p40 = pneg %p34
    %p41 = scmp.eq.s32.totalorder %s11, 1
    %p42 = por %p40, %p41
    %p43 = scmp.ne.s32.totalorder %s35, %s38
    %p44 = scmp.eq.s32.totalorder %s11, 0
    %p45 = por %p43, %p44
    %p46 = scmp.ne.s32.totalorder %s35, %s38
    %p47 = scmp.eq.s32.totalorder %s16, 1
    %p48 = por %p46, %p47
    %p49 = scmp.ne.s32.totalorder %s38, %s39
    %p50 = scmp.eq.s32.totalorder %s16, 0
    %p51 = por %p49, %p50
    %p52 = scmp.ne.s32.totalorder %s38, %s39
    %p53 = scmp.eq.s32.totalorder %s17, 1
    %p54 = por %p52, %p53
    %p56 = scmp.ne.s32.totalorder %s39, %s55
    %p57 = scmp.eq.s32.totalorder %s17, 0
    %p58 = por %p56, %p57
    %s60 = sadd.s32 %s59, 1
    %p63 = scmp.eq.s32.totalorder %s11, 1
    %p64 = scmp.ne.s32.totalorder %s59, %s61
    %p65 = scmp.eq.s32.totalorder %s11, 0
    %p66 = por %p64, %p65
    %p67 = scmp.ne.s32.totalorder %s59, %s61
    %p68 = scmp.eq.s32.totalorder %s16, 1
    %p69 = por %p67, %p68
    %p70 = scmp.ne.s32.totalorder %s61, %s62
    %p71 = scmp.eq.s32.totalorder %s16, 0
    %p72 = por %p70, %p71
    %p73 = scmp.ne.s32.totalorder %s61, %s62
    %p74 = scmp.eq.s32.totalorder %s17, 1
    %p75 = por %p73, %p74
    %p77 = scmp.ne.s32.totalorder %s62, %s76
    %p78 = scmp.eq.s32.totalorder %s17, 0
    %p79 = por %p77, %p78
    %s81 = sadd.s32 %s80, 1
    %p84 = scmp.eq.s32.totalorder %s11, 1
    %p85 = scmp.ne.s32.totalorder %s80, %s82
    %p86 = scmp.eq.s32.totalorder %s11, 0
    %p87 = por %p85, %p86
    %p88 = scmp.ne.s32.totalorder %s80, %s82
    %p89 = scmp.eq.s32.totalorder %s16, 1
    %p90 = por %p88, %p89
    %p91 = scmp.ne.s32.totalorder %s82, %s83
    %p92 = scmp.eq.s32.totalorder %s16, 0
    %p93 = por %p91, %p92
    %p94 = scmp.ne.s32.totalorder %s82, %s83
    %p95 = scmp.eq.s32.totalorder %s17, 1
    %p96 = por %p94, %p95
    %p98 = scmp.ne.s32.totalorder %s83, %s97
    %p99 = scmp.eq.s32.totalorder %s17, 0
    %p100 = por %p98, %p99
    %s102 = sadd.s32 %s101, 1
    %p105 = scmp.eq.s32.totalorder %s11, 1
    %p106 = scmp.ne.s32.totalorder %s101, %s103
    %p107 = scmp.eq.s32.totalorder %s11, 0
    %p108 = por %p106, %p107
    %p109 = scmp.ne.s32.totalorder %s101, %s103
    %p110 = scmp.eq.s32.totalorder %s16, 1
    %p111 = por %p109, %p110
    %p112 = scmp.ne.s32.totalorder %s103, %s104
    %p113 = scmp.eq.s32.totalorder %s16, 0
    %p114 = por %p112, %p113
    %p115 = scmp.ne.s32.totalorder %s103, %s104
    %p116 = scmp.eq.s32.totalorder %s17, 1
    %p117 = por %p115, %p116
    %p119 = scmp.ne.s32.totalorder %s104, %s118
    %p120 = scmp.eq.s32.totalorder %s17, 0
    %p121 = por %p119, %p120
    %s123 = sadd.s32 %s122, 1
    %p126 = scmp.eq.s32.totalorder %s11, 1
    %p127 = scmp.ne.s32.totalorder %s122, %s124
    %p128 = scmp.eq.s32.totalorder %s11, 0
    %p129 = por %p127, %p128
    %p130 = scmp.ne.s32.totalorder %s122, %s124
    %p131 = scmp.eq.s32.totalorder %s16, 1
    %p132 = por %p130, %p131
    %p133 = scmp.ne.s32.totalorder %s124, %s125
    %p134 = scmp.eq.s32.totalorder %s16, 0
    %p135 = por %p133, %p134
    %p136 = scmp.ne.s32.totalorder %s124, %s125
    %p137 = scmp.eq.s32.totalorder %s17, 1
    %p138 = por %p136, %p137
    %p140 = scmp.ne.s32.totalorder %s125, %s139
    %p141 = scmp.eq.s32.totalorder %s17, 0
    %p142 = por %p140, %p141
    %s143 = ssub.s32 %s18, %s30
    %s144 = ssub.s32 %s19, %s26
    %s145 = sor.u32 %s143, %s144
    %p146 = scmp.eq.s32.totalorder %s145, 0
    %s148 = sadd.s32 %s147, 1
    %s149 = scalar_select %p146, %s147, %s148
    %p152 = pneg %p146
    %p153 = scmp.eq.s32.totalorder %s11, 1
    %p154 = por %p152, %p153
    %p155 = scmp.ne.s32.totalorder %s147, %s150
    %p156 = scmp.eq.s32.totalorder %s11, 0
    %p157 = por %p155, %p156
    %p158 = scmp.ne.s32.totalorder %s147, %s150
    %p159 = scmp.eq.s32.totalorder %s16, 1
    %p160 = por %p158, %p159
    %p161 = scmp.ne.s32.totalorder %s150, %s151
    %p162 = scmp.eq.s32.totalorder %s16, 0
    %p163 = por %p161, %p162
    %p164 = scmp.ne.s32.totalorder %s150, %s151
    %p165 = scmp.eq.s32.totalorder %s17, 1
    %p166 = por %p164, %p165
    %p168 = scmp.ne.s32.totalorder %s151, %s167
    %p169 = scmp.eq.s32.totalorder %s17, 0
    %p170 = por %p168, %p169
    %p171 = scmp.le.s32.totalorder 1, %s11
    %p172 = scmp.lt.s32.totalorder %s11, 3
    %p173 = pnand %p171, %p172
    %p174 = pneg %p173
    // Predicated region
    $region9: #{tpu_custom_call.1} parent=5 // pred_check
      _
    $region10: #{tpu_custom_call.1} parent=5 // pred_check_branch
      %176 = sbr.rel (%p173) target = $region12
    $region11: #{tpu_custom_call.1} parent=5 // pred_region
      %s177 = ssub.s32 %s11, 1
      // Predicated region
      $region13: #{tpu_custom_call.1} parent=11 // pred_check
        %p178 = pneg %p72
      $region14: #{tpu_custom_call.1} parent=11 // pred_check_branch
        %180 = sbr.rel (%p178) target = $region16
      $region15: #{tpu_custom_call.1} parent=11 // pred_region
        _
      $region16: #{tpu_custom_call.1} parent=11 // pred_fallthru
        _
      // Predicated region
      $region17: #{tpu_custom_call.1} parent=11 // pred_check
        %p181 = pneg %p93
      $region18: #{tpu_custom_call.1} parent=11 // pred_check_branch
        %183 = sbr.rel (%p181) target = $region20
      $region19: #{tpu_custom_call.1} parent=11 // pred_region
        _
      $region20: #{tpu_custom_call.1} parent=11 // pred_fallthru
        _
      // Predicated region
      $region21: #{tpu_custom_call.1} parent=11 // pred_check
        %p184 = pneg %p114
      $region22: #{tpu_custom_call.1} parent=11 // pred_check_branch
        %186 = sbr.rel (%p184) target = $region24
      $region23: #{tpu_custom_call.1} parent=11 // pred_region
        _
      $region24: #{tpu_custom_call.1} parent=11 // pred_fallthru
        _
      // Predicated region
      $region25: #{tpu_custom_call.1} parent=11 // pred_check
        %p187 = pneg %p135
      $region26: #{tpu_custom_call.1} parent=11 // pred_check_branch
        %189 = sbr.rel (%p187) target = $region28
      $region27: #{tpu_custom_call.1} parent=11 // pred_region
        _
      $region28: #{tpu_custom_call.1} parent=11 // pred_fallthru
        _
    $region12: #{tpu_custom_call.1} parent=5 // pred_fallthru
      _
    %p190 = scmp.lt.s32.totalorder %s11, 2
    // Predicated region
    $region29: #{tpu_custom_call.1} parent=5 // pred_check
      %p191 = pneg %p190
    $region30: #{tpu_custom_call.1} parent=5 // pred_check_branch
      %193 = sbr.rel (%p191) target = $region32
    $region31: #{tpu_custom_call.1} parent=5 // pred_region
      // Predicated region
      $region33: #{tpu_custom_call.1} parent=31 // pred_check
        %p194 = pneg %p45
      $region34: #{tpu_custom_call.1} parent=31 // pred_check_branch
        %196 = sbr.rel (%p194) target = $region36
      $region35: #{tpu_custom_call.1} parent=31 // pred_region
        %s197 = smul.u32 2, %s19
        %p198 = scmp.lt.s32.totalorder %s18, 1
        %s199 = scalar_select %p198, %s18, 1
        %p200 = scmp.lt.s32.totalorder %s197, 1
        %s201 = scalar_select %p200, %s197, 1
        %s202 = smul.addr %s199, 2
        %s203 = sadd.s32 %s201, %s202
        %s204 = smul.addr %s203, 4
        %s205 = scalar_lea.vmem %s0, %s204
        %s206 = smul.u32 2, %s19
      $region36: #{tpu_custom_call.1} parent=31 // pred_fallthru
        _
    $region32: #{tpu_custom_call.1} parent=5 // pred_fallthru
      _
    %p207 = scmp.le.s32.totalorder 1, %s11
    %p208 = scmp.lt.s32.totalorder %s11, 3
    %p209 = pnand %p207, %p208
    %p210 = pneg %p209
    // Predicated region
    $region37: #{tpu_custom_call.1} parent=5 // pred_check
      _
    $region38: #{tpu_custom_call.1} parent=5 // pred_check_branch
      %212 = sbr.rel (%p209) target = $region40
    $region39: #{tpu_custom_call.1} parent=5 // pred_region
      %s213 = ssub.s32 %s11, 1
      %s214 = smul.u32 2, %s21
      %p215 = scmp.lt.s32.totalorder %s20, 1
      %s216 = scalar_select %p215, %s20, 1
      %p217 = scmp.lt.s32.totalorder %s214, 1
      %s218 = scalar_select %p217, %s214, 1
      %s219 = smul.addr %s216, 2
      %s220 = sadd.s32 %s218, %s219
      %s221 = smul.addr %s220, 4
      %s222 = scalar_lea.vmem %s0, %s221
      %p223 = pneg %p51
      %p224 = pneg %p48
      %p225 = pneg %p72
      %p226 = pneg %p69
      %p227 = pneg %p93
      %p228 = pneg %p90
      %p229 = pneg %p114
      %p230 = pneg %p111
      %p231 = pneg %p135
      %p232 = pneg %p132
      %p233 = pneg %p163
      %p234 = pneg %p160
      %s235 = smul.u32 2, %s21
      %p236 = scmp.lt.s32.totalorder %s20, 1
      %s237 = scalar_select %p236, %s20, 1
      %p238 = scmp.lt.s32.totalorder %s235, 1
      %s239 = scalar_select %p238, %s235, 1
      %s240 = smul.addr %s237, 2
      %s241 = sadd.s32 %s239, %s240
      %s242 = smul.addr %s241, 4
      %s243 = scalar_lea.vmem %s5, %s242
      %s244 = smul.u32 2, %s21
      %p245 = scmp.lt.s32.totalorder %s20, 1
      %s246 = scalar_select %p245, %s20, 1
      %p247 = scmp.lt.s32.totalorder %s244, 1
      %s248 = scalar_select %p247, %s244, 1
      %s249 = smul.addr %s246, 2
      %s250 = sadd.s32 %s248, %s249
      %s251 = smul.addr %s250, 4
      %s252 = scalar_lea.vmem %s0, %s251
      %s253 = smul.u32 2, %s21
      %s254 = smul.u32 2, %s21
      %p255 = scmp.lt.s32.totalorder %s20, 1
      %s256 = scalar_select %p255, %s20, 1
      %p257 = scmp.lt.s32.totalorder %s254, 1
      %s258 = scalar_select %p257, %s254, 1
      %s259 = smul.addr %s256, 2
      %s260 = sadd.s32 %s258, %s259
      %s261 = smul.addr %s260, 4
      %s262 = scalar_lea.vmem %s5, %s261
      %s263 = smul.u32 2, %s21
      %v264 = vld [vmem:[%s252] sm:$0x77]
      %v265 = vmax.f32 %v264, 0.0
      %v266 = vld [vmem:[%s1] sm:$0x7]
      %v267 = vld [vmem:[%s2] sm:$0x7]
      %269 = vset.pattern.permute.xlu0 0
      %270 = vperm.xlu0 %269, %v267
      %v271 = vpop.permute.xlu0 %270
      %v274 = vcombine.high %v265, %v265
      %vm275 = vcmask 23552
      %v277 = vsel %vm275, %v266, 0
      %vm279 = vcmask 1042432
      %v280 = vsel %vm279, %v265, 0
      %v282 = vsel %vm279, %v274, 0
      %284 = vmatprep.subr.mxu0 %v282
      %285 = vmatpush1.msra.mxu0 %v280
      %286 = vmatprep.subr.mxu0 0.0
      %287 = vmatpush1.msra.mxu0 0.0
      %288 = vmatprep.subr.mxu0 0.0
      %289 = vmatpush1.msra.mxu0 0.0
      %290 = vmatprep.subr.mxu0 0.0
      %291 = vmatpush1.msra.mxu0 0.0
      %292 = vmatprep.subr.mxu0 0.0
      %293 = vmatpush1.msra.mxu0 0.0
      %294 = vmatprep.subr.mxu0 0.0
      %295 = vmatpush1.msra.mxu0 0.0
      %296 = vmatprep.subr.mxu0 0.0
      %297 = vmatpush1.msra.mxu0 0.0
      %298 = vmatprep.subr.mxu0 0.0
      %299 = vmatpush1.msra.mxu0 0.0
      %300 = vmatprep.subr.mxu0 0.0
      %301 = vmatpush1.msra.mxu0 0.0
      %302 = vmatprep.subr.mxu0 0.0
      %303 = vmatpush1.msra.mxu0 0.0
      %304 = vmatprep.subr.mxu0 0.0
      %305 = vmatpush1.msra.mxu0 0.0
      %306 = vmatprep.subr.mxu0 0.0
      %307 = vmatpush1.msra.mxu0 0.0
      %308 = vmatprep.subr.mxu0 0.0
      %309 = vmatpush1.msra.mxu0 0.0
      %310 = vmatprep.subr.mxu0 0.0
      %311 = vmatpush1.msra.mxu0 0.0
      %312 = vmatprep.subr.mxu0 0.0
      %313 = vmatpush1.msra.mxu0 0.0
      %314 = vmatprep.subr.mxu0 0.0
      %315 = vmatpush1.msra.mxu0 0.0
      %316 = vmatprep.subr.mxu0 0.0
      %317 = vmatpush1.msra.mxu0 0.0
      %318 = vmatprep.subr.mxu0 0.0
      %319 = vmatpush1.msra.mxu0 0.0
      %320 = vmatprep.subr.mxu0 0.0
      %321 = vmatpush1.msra.mxu0 0.0
      %322 = vmatprep.subr.mxu0 0.0
      %323 = vmatpush1.msra.mxu0 0.0
      %324 = vmatprep.subr.mxu0 0.0
      %325 = vmatpush1.msra.mxu0 0.0
      %326 = vmatprep.subr.mxu0 0.0
      %327 = vmatpush1.msra.mxu0 0.0
      %328 = vmatprep.subr.mxu0 0.0
      %329 = vmatpush1.msra.mxu0 0.0
      %330 = vmatprep.subr.mxu0 0.0
      %331 = vmatpush1.msra.mxu0 0.0
      %332 = vmatprep.subr.mxu0 0.0
      %333 = vmatpush1.msra.mxu0 0.0
      %334 = vmatprep.subr.mxu0 0.0
      %335 = vmatpush1.msra.mxu0 0.0
      %336 = vmatprep.subr.mxu0 0.0
      %337 = vmatpush1.msra.mxu0 0.0
      %338 = vmatprep.subr.mxu0 0.0
      %339 = vmatpush1.msra.mxu0 0.0
      %340 = vmatprep.subr.mxu0 0.0
      %341 = vmatpush1.msra.mxu0 0.0
      %342 = vmatprep.subr.mxu0 0.0
      %343 = vmatpush1.msra.mxu0 0.0
      %344 = vmatprep.subr.mxu0 0.0
      %345 = vmatpush1.msra.mxu0 0.0
      %346 = vmatprep.subr.mxu0 0.0
      %347 = vmatpush1.msra.mxu0 0.0
      %348 = vmatprep.mubr.f32.mxu0 0.0
      %349 = vmatmul.mubr.f32.gmra.mrb[0].mxu0 %v277
      %v350 = vpop.f32.mrb[0].mxu0
      %v351 = vadd.f32 %v271, %v350
      %v352 = vpop.f32.mrb[0].mxu0
      %v353 = vadd.f32 %v271, %v352
      %354 = vdwg.mxu0
      %v355 = vmax.f32 %v351, 0.0
      %v356 = vmax.f32 %v353, 0.0
      %v357 = vld [vmem:[%s3] sm:$0x7]
      %v358 = vld [vmem:[%s4] sm:$0x7]
      %360 = vset.pattern.permute.xlu0 0
      %361 = vperm.xlu0 %360, %v358
      %v362 = vpop.permute.xlu0 %361
      %v365 = vsel %vm275, %v357, 0
      %v368 = vsel %vm279, %v355, 0
      %v371 = vsel %vm279, %v356, 0
      %373 = vmatprep.subr.mxu0 %v371
      %374 = vmatpush1.msra.mxu0 %v368
      %375 = vmatprep.subr.mxu0 0.0
      %376 = vmatpush1.msra.mxu0 0.0
      %377 = vmatprep.subr.mxu0 0.0
      %378 = vmatpush1.msra.mxu0 0.0
      %379 = vmatprep.subr.mxu0 0.0
      %380 = vmatpush1.msra.mxu0 0.0
      %381 = vmatprep.subr.mxu0 0.0
      %382 = vmatpush1.msra.mxu0 0.0
      %383 = vmatprep.subr.mxu0 0.0
      %384 = vmatpush1.msra.mxu0 0.0
      %385 = vmatprep.subr.mxu0 0.0
      %386 = vmatpush1.msra.mxu0 0.0
      %387 = vmatprep.subr.mxu0 0.0
      %388 = vmatpush1.msra.mxu0 0.0
      %389 = vmatprep.subr.mxu0 0.0
      %390 = vmatpush1.msra.mxu0 0.0
      %391 = vmatprep.subr.mxu0 0.0
      %392 = vmatpush1.msra.mxu0 0.0
      %393 = vmatprep.subr.mxu0 0.0
      %394 = vmatpush1.msra.mxu0 0.0
      %395 = vmatprep.subr.mxu0 0.0
      %396 = vmatpush1.msra.mxu0 0.0
      %397 = vmatprep.subr.mxu0 0.0
      %398 = vmatpush1.msra.mxu0 0.0
      %399 = vmatprep.subr.mxu0 0.0
      %400 = vmatpush1.msra.mxu0 0.0
      %401 = vmatprep.subr.mxu0 0.0
      %402 = vmatpush1.msra.mxu0 0.0
      %403 = vmatprep.subr.mxu0 0.0
      %404 = vmatpush1.msra.mxu0 0.0
      %405 = vmatprep.subr.mxu0 0.0
      %406 = vmatpush1.msra.mxu0 0.0
      %407 = vmatprep.subr.mxu0 0.0
      %408 = vmatpush1.msra.mxu0 0.0
      %409 = vmatprep.subr.mxu0 0.0
      %410 = vmatpush1.msra.mxu0 0.0
      %411 = vmatprep.subr.mxu0 0.0
      %412 = vmatpush1.msra.mxu0 0.0
      %413 = vmatprep.subr.mxu0 0.0
      %414 = vmatpush1.msra.mxu0 0.0
      %415 = vmatprep.subr.mxu0 0.0
      %416 = vmatpush1.msra.mxu0 0.0
      %417 = vmatprep.subr.mxu0 0.0
      %418 = vmatpush1.msra.mxu0 0.0
      %419 = vmatprep.subr.mxu0 0.0
      %420 = vmatpush1.msra.mxu0 0.0
      %421 = vmatprep.subr.mxu0 0.0
      %422 = vmatpush1.msra.mxu0 0.0
      %423 = vmatprep.subr.mxu0 0.0
      %424 = vmatpush1.msra.mxu0 0.0
      %425 = vmatprep.subr.mxu0 0.0
      %426 = vmatpush1.msra.mxu0 0.0
      %427 = vmatprep.subr.mxu0 0.0
      %428 = vmatpush1.msra.mxu0 0.0
      %429 = vmatprep.subr.mxu0 0.0
      %430 = vmatpush1.msra.mxu0 0.0
      %431 = vmatprep.subr.mxu0 0.0
      %432 = vmatpush1.msra.mxu0 0.0
      %433 = vmatprep.subr.mxu0 0.0
      %434 = vmatpush1.msra.mxu0 0.0
      %435 = vmatprep.subr.mxu0 0.0
      %436 = vmatpush1.msra.mxu0 0.0
      %437 = vmatprep.mubr.f32.mxu0 0.0
      %438 = vmatmul.mubr.f32.gmra.mrb[0].mxu0 %v365
      %v439 = vpop.f32.mrb[0].mxu0
      %v440 = vadd.f32 %v362, %v439
      %v441 = vpop.f32.mrb[0].mxu0
      %v442 = vadd.f32 %v362, %v441
      %443 = vdwg.mxu0
      %v445 = vcombine.high %v264, %v264
      %v447 = vadd.f32 %v440, %v264
      %v448 = vadd.f32 %v442, %v445
      %v451 = vcombine.low %v447, %v448
      %vm453 = vcmask 587780
      %vm454 = vmor %vm453, %vm279
      %455 = vst.msk [vmem:[%s262] sm:$0x77] %vm454, %v451
      %s456 = smul.u32 2, %s21
      %p457 = scmp.lt.s32.totalorder %s20, 1
      %s458 = scalar_select %p457, %s20, 1
      %p459 = scmp.lt.s32.totalorder %s456, 1
      %s460 = scalar_select %p459, %s456, 1
      %s461 = smul.addr %s458, 2
      %s462 = sadd.s32 %s460, %s461
      %s463 = smul.addr %s462, 4
      %s464 = scalar_lea.vmem %s5, %s463
      // Predicated region
      $region41: #{tpu_custom_call.1} parent=39 // pred_check
        %p465 = pneg %p160
      $region42: #{tpu_custom_call.1} parent=39 // pred_check_branch
        %467 = sbr.rel (%p465) target = $region44
      $region43: #{tpu_custom_call.1} parent=39 // pred_region
        %s468 = smul.u32 2, %s21
      $region44: #{tpu_custom_call.1} parent=39 // pred_fallthru
        _
    $region40: #{tpu_custom_call.1} parent=5 // pred_fallthru
      _
    %p469 = scmp.le.s32.totalorder 2, %s11
    // Predicated region
    $region45: #{tpu_custom_call.1} parent=5 // pred_check
      %p470 = pneg %p469
    $region46: #{tpu_custom_call.1} parent=5 // pred_check_branch
      %472 = sbr.rel (%p470) target = $region48
    $region47: #{tpu_custom_call.1} parent=5 // pred_region
      %s473 = ssub.s32 %s11, 2
      // Predicated region
      $region49: #{tpu_custom_call.1} parent=47 // pred_check
        %p474 = pneg %p166
      $region50: #{tpu_custom_call.1} parent=47 // pred_check_branch
        %476 = sbr.rel (%p474) target = $region52
      $region51: #{tpu_custom_call.1} parent=47 // pred_region
        %s477 = smul.u32 2, %s23
        %p478 = scmp.lt.s32.totalorder %s22, 1
        %s479 = scalar_select %p478, %s22, 1
        %p480 = scmp.lt.s32.totalorder %s477, 1
        %s481 = scalar_select %p480, %s477, 1
        %s482 = smul.addr %s479, 2
        %s483 = sadd.s32 %s481, %s482
        %s484 = smul.addr %s483, 4
        %s485 = scalar_lea.vmem %s5, %s484
      $region52: #{tpu_custom_call.1} parent=47 // pred_fallthru
        _
    $region48: #{tpu_custom_call.1} parent=5 // pred_fallthru
      _
  $region6: #{tpu_custom_call.1} parent=0 // loop_footer
    %s15 = sadd.s32 1, %s11
  $region7: #{tpu_custom_call.1} parent=0 // loop_footer_branch
    %10 = sbr.rel target = $region3
  $region8: #{tpu_custom_call.1} parent=0 // loop_exit
    _

</llo_original>
